<compile_context>
chip_gen: v5e
topology: v5e:2x2
jax: 0.10.0
libtpu: 0.0.40
codegen_flags: <defaults>
</compile_context>

<pallas_src>
import jax
import jax.numpy as jnp
from jax import lax
from jax.experimental import pallas as pl
from jax.experimental.pallas import tpu as pltpu


def _round_up(x, m):
    return (x + m - 1) // m * m


def _vmem_capacity_bytes():
    """Physical VMEM of the current chip; conservative fallback = v7x 64 MiB."""
    try:
        return int(pltpu.get_tpu_info().vmem_capacity_bytes)
    except Exception:
        return 64 * 1024 * 1024


def _pick_tn(h_pad, w_itemsize, w_buf_budget):
    """Largest TN (multiple of 128, divides h_pad) whose single weight buffer
    (TN * h_pad * itemsize) fits the budget, while keeping >= 2 N blocks so
    both v7x TensorCores get work (unless H_pad == 128)."""
    best = 128
    t = 128
    while t <= h_pad:
        if h_pad % t == 0 and t * h_pad * w_itemsize <= w_buf_budget:
            if h_pad // t >= 2 or h_pad == 128:
                best = t
        t += 128
    return best


def pad_pooler_params(weight, bias):
    """Model-load-time padding of the Linear params to lane multiples, so the
    per-call HBM read+write of an H^2 pad is never paid in the hot path."""
    H = weight.shape[0]
    H_pad = _round_up(H, 128)
    b2 = bias.reshape(1, -1)
    if H_pad != H:
        weight = jnp.pad(weight, ((0, H_pad - H), (0, H_pad - H)))
        b2 = jnp.pad(b2, ((0, 0), (0, H_pad - H)))
    return weight, b2


def _pooler_kernel(x_ref, w_ref, b_ref, o_ref):
    # x_ref: [B_pad, H_pad] resident activations
    # w_ref: [TN, H_pad]    weight slab in the original PyTorch [out, in] layout
    # b_ref: [1, TN]        bias tile
    # o_ref: [B_pad, TN]    output tile
    #
    # y = x @ W.T without any host-side transpose: contract dim 1 of x ("in")
    # with dim 1 of w ("in"); the MXU consumes the transposed-RHS form natively.
    y = lax.dot_general(
        x_ref[...], w_ref[...],
        dimension_numbers=(((1,), (1,)), ((), ())),
        preferred_element_type=jnp.float32,
    )
    y = y + b_ref[...].astype(jnp.float32)
    o_ref[...] = jax.nn.sigmoid(y).astype(o_ref.dtype)


def pooler_forward(hidden_states, weight, bias, *, force_pallas=False,
                   min_pallas_hidden=512):
    """sigmoid(hidden_states[0][:, 0] @ weight.T + bias).

    hidden_states: [L, B, S, H]; weight: [H, H] (or pre-padded [H_pad, H_pad])
    in PyTorch Linear [out, in] layout; bias: [H] (or pre-padded [1, H_pad]).
    Returns [B, H] in hidden_states' dtype.
    """
    first_token = hidden_states[0][:, 0]                 # [B, H] glue slice (tiny)
    B, H = first_token.shape
    out_dtype = first_token.dtype

    if not force_pallas and H < min_pallas_hidden:
        # Fits in a handful of vregs: pallas_call fixed overhead dominates, so
        # let XLA fuse GEMM + bias + sigmoid.
        w_h = weight[:H, :H]
        b_h = bias.reshape(-1)[:H]
        return jax.nn.sigmoid(first_token @ w_h.T + b_h)

    H_pad = _round_up(H, 128)                            # lane multiple

    # Stream the weight in its native dtype (bf16 halves HBM traffic); match
    # the tiny activation tile to it, accumulation stays f32 in the kernel.
    x = first_token
    if x.dtype != weight.dtype:
        x = x.astype(weight.dtype)

    sub = 8 if jnp.dtype(x.dtype).itemsize >= 4 else 16  # sublane packing
    B_pad = max(sub, _round_up(B, sub))

    if (B_pad, H_pad) != (B, H):
        x = jnp.pad(x, ((0, B_pad - B), (0, H_pad - H)))

    w = weight
    b = bias.reshape(1, -1) if bias.ndim == 1 else bias
    if w.shape != (H_pad, H_pad):
        # TODO(synk): callers should use pad_pooler_params() at model-load time
        # so this H^2 HBM read+write is not paid per call.
        w = jnp.pad(w, ((0, H_pad - w.shape[0]), (0, H_pad - w.shape[1])))
    if b.shape[1] != H_pad:
        b = jnp.pad(b, ((0, 0), (0, H_pad - b.shape[1])))

    w_itemsize = jnp.dtype(w.dtype).itemsize
    vmem_phys = _vmem_capacity_bytes()                   # 64 MiB v7x, 128 MiB v5e/v6e
    w_buf_budget = vmem_phys // 8                        # single buffer; x2 for double-buffering
    TN = _pick_tn(H_pad, w_itemsize, w_buf_budget)
    grid = (H_pad // TN,)

    cost = pl.CostEstimate(
        flops=2 * B_pad * H_pad * H_pad,
        transcendentals=B_pad * H_pad,
        bytes_accessed=(H_pad * H_pad * w_itemsize
                        + B_pad * H_pad * (jnp.dtype(x.dtype).itemsize
                                           + jnp.dtype(out_dtype).itemsize)),
    )

    out = pl.pallas_call(
        _pooler_kernel,
        out_shape=jax.ShapeDtypeStruct((B_pad, H_pad), out_dtype),
        grid_spec=pltpu.PrefetchScalarGridSpec(
            num_scalar_prefetch=0,
            grid=grid,
            in_specs=[
                pl.BlockSpec((B_pad, H_pad), lambda n: (0, 0)),   # activations (resident)
                pl.BlockSpec((TN, H_pad), lambda n: (n, 0)),      # weight [out, in] slab
                pl.BlockSpec((1, TN), lambda n: (0, n)),          # bias tile
            ],
            out_specs=pl.BlockSpec((B_pad, TN), lambda n: (0, n)),
        ),
        compiler_params=pltpu.CompilerParams(
            # Single N axis, weight slabs independent -> shard across v7x's 2 TCs.
            dimension_semantics=("parallel",),
            # Half the physical VMEM: 32 MiB on v7x, 64 MiB on v5e/v6e; the
            # double-buffered weight slab was sized to <= vmem_phys/4 above.
            vmem_limit_bytes=vmem_phys // 2,
        ),
        cost_estimate=cost,
    )(x, w, b)

    return out[:B, :H]


if __name__ == "__main__":
    key = jax.random.PRNGKey(0)
    k1, k2, k3 = jax.random.split(key, 3)

    # Small shapes consistent with the module's forward: [L, B, S, H].
    # H=256 keeps things small while exercising a real 2-block N grid with
    # full-width weight slabs.
    L, B, S, H = 1, 2, 8, 256
    hidden_states = jax.random.normal(k1, (L, B, S, H), dtype=jnp.float32)
    weight = jax.random.normal(k2, (H, H), dtype=jnp.float32) * 0.02
    bias = jax.random.normal(k3, (H,), dtype=jnp.float32) * 0.02

    # "Model load time": pad params once (no-op here since H % 128 == 0).
    w_p, b_p = pad_pooler_params(weight, bias)

    # Force the Pallas path so the kernel is exercised at test shapes
    # (default dispatch routes H<512 to plain fused XLA).
    out = pooler_forward(hidden_states, w_p, b_p, force_pallas=True)
    jax.block_until_ready(out)
    ref = jax.nn.sigmoid(hidden_states[0][:, 0] @ weight.T + bias)
    assert out.shape == (B, H)
    assert jnp.allclose(out, ref, atol=1e-5, rtol=1e-5)

    # Second check: H not a lane multiple and odd batch -> exercises the
    # padding fallback path and row/col slicing.
    H2, B2 = 200, 3
    hs2 = jax.random.normal(k1, (1, B2, 4, H2), dtype=jnp.float32)
    w2 = jax.random.normal(k2, (H2, H2), dtype=jnp.float32) * 0.02
    b2 = jax.random.normal(k3, (H2,), dtype=jnp.float32) * 0.02
    out2 = pooler_forward(hs2, w2, b2, force_pallas=True)
    jax.block_until_ready(out2)
    ref2 = jax.nn.sigmoid(hs2[0][:, 0] @ w2.T + b2)
    assert out2.shape == (B2, H2)
    assert jnp.allclose(out2, ref2, atol=1e-5, rtol=1e-5)

    print("KERNEL_OK")
</pallas_src>

<mosaic_0001>
module attributes {stable_mosaic.version = 11 : i64} {
  func.func @_pooler_kernel(%arg0: i32, %arg1: memref<8x256xf32, #tpu.memory_space<vmem>>, %arg2: memref<128x256xf32, #tpu.memory_space<vmem>>, %arg3: memref<1x128xf32, #tpu.memory_space<vmem>>, %arg4: memref<8x128xf32, #tpu.memory_space<vmem>>) attributes {dimension_semantics = [#tpu.dimension_semantics<parallel>], iteration_bounds = array<i64: 2>, scalar_prefetch = 0 : i64, scratch_operands = 0 : i64, tpu.core_type = #tpu.core_type<tc>, window_params = [{pipeline_mode = #tpu.pipeline_mode<synchronous>, transform_indices = @transform_0, window_bounds = array<i64: 8, 256>}, {transform_indices = @transform_1, window_bounds = array<i64: 128, 256>}, {transform_indices = @transform_2, window_bounds = array<i64: 1, 128>}, {transform_indices = @transform_3, window_bounds = array<i64: 8, 128>}]} {
    %c0 = arith.constant 0 : index
    %c0_0 = arith.constant 0 : index
    %0 = vector.load %arg1[%c0, %c0_0] : memref<8x256xf32, #tpu.memory_space<vmem>>, vector<8x256xf32>
    %c0_1 = arith.constant 0 : index
    %c0_2 = arith.constant 0 : index
    %1 = vector.load %arg2[%c0_1, %c0_2] : memref<128x256xf32, #tpu.memory_space<vmem>>, vector<128x256xf32>
    %cst = arith.constant dense<0.000000e+00> : vector<8x128xf32>
    %2 = tpu.matmul %0, %1, %cst {dimension_numbers = #tpu.dot_dimension_numbers<[1], [1], [0], [0], [0, 0, 1, 0], [], []>} : vector<8x256xf32>, vector<128x256xf32>, vector<8x128xf32> -> vector<8x128xf32>
    %c0_3 = arith.constant 0 : index
    %c0_4 = arith.constant 0 : index
    %3 = vector.load %arg3[%c0_3, %c0_4] : memref<1x128xf32, #tpu.memory_space<vmem>>, vector<1x128xf32>
    %4 = vector.broadcast %3 : vector<1x128xf32> to vector<8x128xf32>
    %5 = arith.addf %2, %4 : vector<8x128xf32>
    %6 = arith.negf %5 : vector<8x128xf32>
    %7 = math.exp %6 : vector<8x128xf32>
    %cst_5 = arith.constant 1.000000e+00 : f32
    %8 = vector.broadcast %cst_5 : f32 to vector<8x128xf32>
    %9 = arith.addf %8, %7 : vector<8x128xf32>
    %10 = arith.divf %8, %9 : vector<8x128xf32>
    %c0_6 = arith.constant 0 : index
    %c0_7 = arith.constant 0 : index
    %11 = vector.load %arg4[%c0_6, %c0_7] : memref<8x128xf32, #tpu.memory_space<vmem>>, vector<8x128xf32>
    tpu.vector_store %arg4[%c0_6, %c0_7], %10 {strides = array<i32>} : memref<8x128xf32, #tpu.memory_space<vmem>>, vector<8x128xf32>,
    return
  }
  func.func @transform_0(%arg0: i32) -> (i32, i32) {
    %c0_i32 = arith.constant 0 : i32
    %c0_i32_0 = arith.constant 0 : i32
    %c0_i32_1 = arith.constant 0 : i32
    return %c0_i32, %c0_i32_0 : i32, i32
  }
  func.func @transform_1(%arg0: i32) -> (i32, i32) {
    %c0_i32 = arith.constant 0 : i32
    %c0_i32_0 = arith.constant 0 : i32
    return %arg0, %c0_i32 : i32, i32
  }
  func.func @transform_2(%arg0: i32) -> (i32, i32) {
    %c0_i32 = arith.constant 0 : i32
    %c0_i32_0 = arith.constant 0 : i32
    return %c0_i32, %arg0 : i32, i32
  }
  func.func @transform_3(%arg0: i32) -> (i32, i32) {
    %c0_i32 = arith.constant 0 : i32
    %c0_i32_0 = arith.constant 0 : i32
    return %c0_i32, %arg0 : i32, i32
  }
}

</mosaic_0001>

<llo_original>
// kernel: tpu_custom_call.1
$region0: #{tpu_custom_call.1}
  #allocation0 [shape = 'u32[]', space=smem, size = 0x4, offset = 0x4, fixed_abs, tag = 'smem constant byte address 0x4 - core index']
  #allocation1 [shape = 'u32[72,128]{1,0:T(1,128)}', space=vmem, size = 0x9000, scoped, tag = 'internal scratch']
  %s0 = inlined_call_operand.hbm [shape: f32[8,256], index: 0, kind: input, shape index: {}]
  %s1 = inlined_call_operand.hbm [shape: f32[256,256], index: 1, kind: input, shape index: {}]
  %s2 = inlined_call_operand.hbm [shape: f32[1,256], index: 2, kind: input, shape index: {}]
  %s3 = inlined_call_operand.hbm [shape: f32[8,256], index: 3, kind: output, shape index: {}]
  %s4 = sld [smem:[#allocation0]]
  $region57: #{tpu_custom_call.1} parent=0
    _
  %s6 = ssub.s32 1, %s4
  %s7 = scalar_select 0, %s6, %s4
  $region1: #{tpu_custom_call.1} parent=0
    #allocation2 [shape = 'u8[8192]{0}', space=vmem, size = 0x2000, scoped, tag = 'input window, operand 0, single buffered']
    #allocation3 [shape = 's32[2]{0}', space=sflag, size = 0x8, scoped, tag = 'scoped memory for tpu_custom_call.1']
    #allocation4 [shape = 's32[2]{0}', space=sflag, size = 0x8, scoped, tag = 'scoped memory for tpu_custom_call.1']
    #allocation5 [shape = 'u8[262144]{0}', space=vmem, size = 0x40000, scoped, tag = 'input window, operand 1']
    #allocation6 [shape = 's32[2]{0}', space=sflag, size = 0x8, scoped, tag = 'scoped memory for tpu_custom_call.1']
    #allocation7 [shape = 'u8[1024]{0}', space=vmem, size = 0x400, scoped, tag = 'input window, operand 2']
    #allocation8 [shape = 'u8[8192]{0}', space=vmem, size = 0x2000, scoped, tag = 'output window, operand 0']
    %8 = vsyncpa [#allocation3], 0
    %9 = vsyncpa [#allocation6], 0
    %s10 = scalar_lea.sflag [#allocation6], 1
    %11 = vsyncpa %s10, 0
    %12 = vsyncpa [#allocation4], 0
    %s13 = scalar_lea.sflag [#allocation4], 1
    %14 = vsyncpa %s13, 0
    loop: start=0, step=1, limit=4
    $region2: #{tpu_custom_call.1} parent=1 // loop_pre_header
      _
    $region3: #{tpu_custom_call.1} parent=1 // loop_header
      %s16 = sphi 0, %s20
      %p17 = scmp.ge.s32.totalorder %s16, 4
      %s24 = sphi 0, %s24
      %s26 = sphi 0, %s24
      %s27 = sphi 0, %s26
      %s41 = sphi 0, %s27
      %s47 = sphi 0, %s49
      %s50 = sphi 0, %s47
      %s51 = sphi 0, %s50
      %s67 = sphi 0, %s51
      %s73 = sphi 0, %s75
      %s76 = sphi 0, %s73
      %s77 = sphi 0, %s76
      %s93 = sphi 0, %s77
      %s99 = sphi 0, %s101
      %s102 = sphi 0, %s99
      %s103 = sphi 0, %s102
      %s119 = sphi 0, %s103
    $region4: #{tpu_custom_call.1} parent=1 // loop_header_branch
      %19 = sbr.rel (%p17) target = $region8
    $region5: #{tpu_custom_call.1} parent=1 // loop_body
      %s21 = ssub.s32 %s16, 1
      %s22 = ssub.s32 %s16, 2
      %s23 = sadd.s32 %s16, 1
      %s25 = sadd.s32 %s24, 1
      %p28 = scmp.eq.s32.totalorder %s16, 1
      %p29 = scmp.ne.s32.totalorder %s24, %s26
      %p30 = scmp.eq.s32.totalorder %s16, 0
      %p31 = por %p29, %p30
      %p32 = scmp.ne.s32.totalorder %s24, %s26
      %p33 = scmp.eq.s32.totalorder %s21, 1
      %p34 = por %p32, %p33
      %p35 = scmp.ne.s32.totalorder %s26, %s27
      %p36 = scmp.eq.s32.totalorder %s21, 0
      %p37 = por %p35, %p36
      %p38 = scmp.ne.s32.totalorder %s26, %s27
      %p39 = scmp.eq.s32.totalorder %s22, 1
      %p40 = por %p38, %p39
      %p42 = scmp.ne.s32.totalorder %s27, %s41
      %p43 = scmp.eq.s32.totalorder %s22, 0
      %p44 = por %p42, %p43
      %s45 = ssub.s32 %s16, %s23
      %p46 = scmp.eq.s32.totalorder %s45, 0
      %s48 = sadd.s32 %s47, 1
      %s49 = scalar_select %p46, %s47, %s48
      %p52 = pneg %p46
      %p53 = scmp.eq.s32.totalorder %s16, 1
      %p54 = por %p52, %p53
      %p55 = scmp.ne.s32.totalorder %s47, %s50
      %p56 = scmp.eq.s32.totalorder %s16, 0
      %p57 = por %p55, %p56
      %p58 = scmp.ne.s32.totalorder %s47, %s50
      %p59 = scmp.eq.s32.totalorder %s21, 1
      %p60 = por %p58, %p59
      %p61 = scmp.ne.s32.totalorder %s50, %s51
      %p62 = scmp.eq.s32.totalorder %s21, 0
      %p63 = por %p61, %p62
      %p64 = scmp.ne.s32.totalorder %s50, %s51
      %p65 = scmp.eq.s32.totalorder %s22, 1
      %p66 = por %p64, %p65
      %p68 = scmp.ne.s32.totalorder %s51, %s67
      %p69 = scmp.eq.s32.totalorder %s22, 0
      %p70 = por %p68, %p69
      %s71 = ssub.s32 %s16, %s23
      %p72 = scmp.eq.s32.totalorder %s71, 0
      %s74 = sadd.s32 %s73, 1
      %s75 = scalar_select %p72, %s73, %s74
      %p78 = pneg %p72
      %p79 = scmp.eq.s32.totalorder %s16, 1
      %p80 = por %p78, %p79
      %p81 = scmp.ne.s32.totalorder %s73, %s76
      %p82 = scmp.eq.s32.totalorder %s16, 0
      %p83 = por %p81, %p82
      %p84 = scmp.ne.s32.totalorder %s73, %s76
      %p85 = scmp.eq.s32.totalorder %s21, 1
      %p86 = por %p84, %p85
      %p87 = scmp.ne.s32.totalorder %s76, %s77
      %p88 = scmp.eq.s32.totalorder %s21, 0
      %p89 = por %p87, %p88
      %p90 = scmp.ne.s32.totalorder %s76, %s77
      %p91 = scmp.eq.s32.totalorder %s22, 1
      %p92 = por %p90, %p91
      %p94 = scmp.ne.s32.totalorder %s77, %s93
      %p95 = scmp.eq.s32.totalorder %s22, 0
      %p96 = por %p94, %p95
      %s97 = ssub.s32 %s16, %s23
      %p98 = scmp.eq.s32.totalorder %s97, 0
      %s100 = sadd.s32 %s99, 1
      %s101 = scalar_select %p98, %s99, %s100
      %p104 = pneg %p98
      %p105 = scmp.eq.s32.totalorder %s16, 1
      %p106 = por %p104, %p105
      %p107 = scmp.ne.s32.totalorder %s99, %s102
      %p108 = scmp.eq.s32.totalorder %s16, 0
      %p109 = por %p107, %p108
      %p110 = scmp.ne.s32.totalorder %s99, %s102
      %p111 = scmp.eq.s32.totalorder %s21, 1
      %p112 = por %p110, %p111
      %p113 = scmp.ne.s32.totalorder %s102, %s103
      %p114 = scmp.eq.s32.totalorder %s21, 0
      %p115 = por %p113, %p114
      %p116 = scmp.ne.s32.totalorder %s102, %s103
      %p117 = scmp.eq.s32.totalorder %s22, 1
      %p118 = por %p116, %p117
      %p120 = scmp.ne.s32.totalorder %s103, %s119
      %p121 = scmp.eq.s32.totalorder %s22, 0
      %p122 = por %p120, %p121
      %p123 = scmp.le.s32.totalorder 1, %s16
      %p124 = scmp.lt.s32.totalorder %s16, 3
      %p125 = pnand %p123, %p124
      %p126 = pneg %p125
      // Predicated region
      $region9: #{tpu_custom_call.1} parent=5 // pred_check
        _
      $region10: #{tpu_custom_call.1} parent=5 // pred_check_branch
        %128 = sbr.rel (%p125) target = $region12
      $region11: #{tpu_custom_call.1} parent=5 // pred_region
        %s129 = ssub.s32 %s16, 1
        // Predicated region
        $region13: #{tpu_custom_call.1} parent=11 // pred_check
          %p130 = pneg %p37
        $region14: #{tpu_custom_call.1} parent=11 // pred_check_branch
          %132 = sbr.rel (%p130) target = $region16
        $region15: #{tpu_custom_call.1} parent=11 // pred_region
          %134 = vsyncadd [#allocation3], 0
          %s136 = sshll.u32 %s0, 4
          %s137 = int_to_ptr.hbm [resolvable:$true] %s136
          %s138 = sshll.u32 [#allocation2], 4
          %s139 = int_to_ptr.vmem [resolvable:$true] %s138
          %141 = dma.hbm_to_vmem [thread:$0]  %s137, 256, %s139, [#allocation3]
        $region16: #{tpu_custom_call.1} parent=11 // pred_fallthru
          _
      $region12: #{tpu_custom_call.1} parent=5 // pred_fallthru
        _
      %p142 = scmp.lt.s32.totalorder %s16, 2
      // Predicated region
      $region17: #{tpu_custom_call.1} parent=5 // pred_check
        %p143 = pneg %p142
      $region18: #{tpu_custom_call.1} parent=5 // pred_check_branch
        %145 = sbr.rel (%p143) target = $region20
      $region19: #{tpu_custom_call.1} parent=5 // pred_region
        // Predicated region
        $region21: #{tpu_custom_call.1} parent=19 // pred_check
          %p146 = pneg %p57
        $region22: #{tpu_custom_call.1} parent=19 // pred_check_branch
          %148 = sbr.rel (%p146) target = $region24
        $region23: #{tpu_custom_call.1} parent=19 // pred_region
          %s149 = sand.u32 %s16, 1
          %s150 = scalar_lea.sflag [#allocation6], %s149
          %s151 = sand.u32 %s47, 1
          %s152 = smul.addr %s151, 256
          %s153 = scalar_lea.vmem [#allocation5], %s152
          %s154 = smul.u32 16, %s16
          %156 = vsyncadd %s150, 0
          %s157 = smul.addr %s154, 2
          %s158 = smul.addr %s157, 8
          %s159 = scalar_lea.hbm %s1, %s158
          %s160 = sshll.u32 %s159, 4
          %s161 = int_to_ptr.hbm [resolvable:$true] %s160
          %s162 = sshll.u32 %s153, 4
          %s163 = int_to_ptr.vmem [resolvable:$true] %s162
          %168 = dma.hbm_to_vmem [thread:$0]  %s161, 4096, %s163, %s150, 256, 256, 16
        $region24: #{tpu_custom_call.1} parent=19 // pred_fallthru
          _
        // Predicated region
        $region25: #{tpu_custom_call.1} parent=19 // pred_check
          %p169 = pneg %p83
        $region26: #{tpu_custom_call.1} parent=19 // pred_check_branch
          %171 = sbr.rel (%p169) target = $region28
        $region27: #{tpu_custom_call.1} parent=19 // pred_region
          %s172 = sand.u32 %s16, 1
          %s173 = scalar_lea.sflag [#allocation6], %s172
          %s174 = sand.u32 %s73, 1
          %s175 = scalar_lea.vmem [#allocation7], %s174
          %177 = vsyncadd %s173, 0
          %s178 = scalar_lea.hbm %s2, %s16
          %s180 = sshll.u32 %s178, 4
          %s181 = int_to_ptr.hbm [resolvable:$true] %s180
          %s182 = sshll.u32 %s175, 4
          %s183 = int_to_ptr.vmem [resolvable:$true] %s182
          %185 = dma.hbm_to_vmem [thread:$0]  %s181, 16, %s183, %s173
        $region28: #{tpu_custom_call.1} parent=19 // pred_fallthru
          _
      $region20: #{tpu_custom_call.1} parent=5 // pred_fallthru
        _
      %p186 = scmp.le.s32.totalorder 1, %s16
      %p187 = scmp.lt.s32.totalorder %s16, 3
      %p188 = pnand %p186, %p187
      %p189 = pneg %p188
      // Predicated region
      $region29: #{tpu_custom_call.1} parent=5 // pred_check
        _
      $region30: #{tpu_custom_call.1} parent=5 // pred_check_branch
        %191 = sbr.rel (%p188) target = $region32
      $region31: #{tpu_custom_call.1} parent=5 // pred_region
        %s192 = ssub.s32 %s16, 1
        // Predicated region
        $region33: #{tpu_custom_call.1} parent=31 // pred_check
          %p193 = pneg %p37
        $region34: #{tpu_custom_call.1} parent=31 // pred_check_branch
          %195 = sbr.rel (%p193) target = $region36
        $region35: #{tpu_custom_call.1} parent=31 // pred_region
          %197 = dma.done [#allocation3], 256
        $region36: #{tpu_custom_call.1} parent=31 // pred_fallthru
          _
        %s198 = sand.u32 %s21, 1
        %s199 = scalar_lea.sflag [#allocation6], %s198
        %s200 = sand.u32 %s50, 1
        %s201 = smul.addr %s200, 256
        %s202 = scalar_lea.vmem [#allocation5], %s201
        // Predicated region
        $region37: #{tpu_custom_call.1} parent=31 // pred_check
          %p203 = pneg %p63
        $region38: #{tpu_custom_call.1} parent=31 // pred_check_branch
          %205 = sbr.rel (%p203) target = $region40
        $region39: #{tpu_custom_call.1} parent=31 // pred_region
          %207 = dma.done %s199, 4096
        $region40: #{tpu_custom_call.1} parent=31 // pred_fallthru
          _
        %s208 = sand.u32 %s21, 1
        %s209 = scalar_lea.sflag [#allocation6], %s208
        %s210 = sand.u32 %s76, 1
        %s211 = scalar_lea.vmem [#allocation7], %s210
        // Predicated region
        $region41: #{tpu_custom_call.1} parent=31 // pred_check
          %p212 = pneg %p89
        $region42: #{tpu_custom_call.1} parent=31 // pred_check_branch
          %214 = sbr.rel (%p212) target = $region44
        $region43: #{tpu_custom_call.1} parent=31 // pred_region
          %216 = dma.done %s209, 16
        $region44: #{tpu_custom_call.1} parent=31 // pred_fallthru
          _
        %p217 = pneg %p37
        %p218 = pneg %p34
        %s219 = sand.u32 %s21, 1
        %s220 = scalar_lea.sflag [#allocation6], %s219
        %s221 = sand.u32 %s50, 1
        %s222 = smul.addr %s221, 256
        %s223 = scalar_lea.vmem [#allocation5], %s222
        %p224 = pneg %p63
        %p225 = pneg %p60
        %s226 = sand.u32 %s21, 1
        %s227 = scalar_lea.sflag [#allocation6], %s226
        %s228 = sand.u32 %s76, 1
        %s229 = scalar_lea.vmem [#allocation7], %s228
        %p230 = pneg %p89
        %p231 = pneg %p86
        %p232 = pneg %p115
        %p233 = pneg %p112
        %s234 = sand.u32 %s102, 1
        %s235 = scalar_lea.sflag [#allocation4], %s234
        %s236 = sand.u32 %s102, 1
        %s237 = smul.addr %s236, 8
        %s238 = scalar_lea.vmem [#allocation8], %s237
        %s239 = smul.u32 16, %s21
        %v240 = vld [vmem:[#allocation2] sm:$0xff]
        %v241 = vld [vmem:[#allocation2 + $0x8] sm:$0xff]
        %v242 = vld [vmem:[%s202] sm:$0xff]
        %v243 = vld [vmem:[%s202 + $0x8] sm:$0xff]
        %v244 = vld [vmem:[%s202 + $0x10] sm:$0xff]
        %v245 = vld [vmem:[%s202 + $0x18] sm:$0xff]
        %v246 = vld [vmem:[%s202 + $0x20] sm:$0xff]
        %v247 = vld [vmem:[%s202 + $0x28] sm:$0xff]
        %v248 = vld [vmem:[%s202 + $0x30] sm:$0xff]
        %v249 = vld [vmem:[%s202 + $0x38] sm:$0xff]
        %v250 = vld [vmem:[%s202 + $0x40] sm:$0xff]
        %v251 = vld [vmem:[%s202 + $0x48] sm:$0xff]
        %v252 = vld [vmem:[%s202 + $0x50] sm:$0xff]
        %v253 = vld [vmem:[%s202 + $0x58] sm:$0xff]
        %v254 = vld [vmem:[%s202 + $0x60] sm:$0xff]
        %v255 = vld [vmem:[%s202 + $0x68] sm:$0xff]
        %v256 = vld [vmem:[%s202 + $0x70] sm:$0xff]
        %v257 = vld [vmem:[%s202 + $0x78] sm:$0xff]
        %v258 = vld [vmem:[%s202 + $0x80] sm:$0xff]
        %v259 = vld [vmem:[%s202 + $0x88] sm:$0xff]
        %v260 = vld [vmem:[%s202 + $0x90] sm:$0xff]
        %v261 = vld [vmem:[%s202 + $0x98] sm:$0xff]
        %v262 = vld [vmem:[%s202 + $0xa0] sm:$0xff]
        %v263 = vld [vmem:[%s202 + $0xa8] sm:$0xff]
        %v264 = vld [vmem:[%s202 + $0xb0] sm:$0xff]
        %v265 = vld [vmem:[%s202 + $0xb8] sm:$0xff]
        %v266 = vld [vmem:[%s202 + $0xc0] sm:$0xff]
        %v267 = vld [vmem:[%s202 + $0xc8] sm:$0xff]
        %v268 = vld [vmem:[%s202 + $0xd0] sm:$0xff]
        %v269 = vld [vmem:[%s202 + $0xd8] sm:$0xff]
        %v270 = vld [vmem:[%s202 + $0xe0] sm:$0xff]
        %v271 = vld [vmem:[%s202 + $0xe8] sm:$0xff]
        %v272 = vld [vmem:[%s202 + $0xf0] sm:$0xff]
        %v273 = vld [vmem:[%s202 + $0xf8] sm:$0xff]
        %v274 = vld [vmem:[%s211] sm:$0x1]
        %v276 = vperm.slane %v274, 0
        %278 = vmatpush.xpose.msra.mxu0 %v272
        %279 = vmatpush.xpose.msra.mxu0 %v270
        %280 = vmatpush.xpose.msra.mxu0 %v268
        %281 = vmatpush.xpose.msra.mxu0 %v266
        %282 = vmatpush.xpose.msra.mxu0 %v264
        %283 = vmatpush.xpose.msra.mxu0 %v262
        %284 = vmatpush.xpose.msra.mxu0 %v260
        %285 = vmatpush.xpose.msra.mxu0 %v258
        %286 = vmatpush.xpose.msra.mxu0 %v256
        %287 = vmatpush.xpose.msra.mxu0 %v254
        %288 = vmatpush.xpose.msra.mxu0 %v252
        %289 = vmatpush.xpose.msra.mxu0 %v250
        %290 = vmatpush.xpose.msra.mxu0 %v248
        %291 = vmatpush.xpose.msra.mxu0 %v246
        %292 = vmatpush.xpose.msra.mxu0 %v244
        %293 = vmatpush.xpose.msra.mxu0 %v242
        %294 = vmatmul.f32.gmra.mxu0 %v240
        %v295 = vpop.f32.mrf.mxu0
        %v296 = vadd.f32 %v276, %v295
        %297 = vdwg.mxu0
        %298 = vmatpush.xpose.msra.mxu0 %v273
        %299 = vmatpush.xpose.msra.mxu0 %v271
        %300 = vmatpush.xpose.msra.mxu0 %v269
        %301 = vmatpush.xpose.msra.mxu0 %v267
        %302 = vmatpush.xpose.msra.mxu0 %v265
        %303 = vmatpush.xpose.msra.mxu0 %v263
        %304 = vmatpush.xpose.msra.mxu0 %v261
        %305 = vmatpush.xpose.msra.mxu0 %v259
        %306 = vmatpush.xpose.msra.mxu0 %v257
        %307 = vmatpush.xpose.msra.mxu0 %v255
        %308 = vmatpush.xpose.msra.mxu0 %v253
        %309 = vmatpush.xpose.msra.mxu0 %v251
        %310 = vmatpush.xpose.msra.mxu0 %v249
        %311 = vmatpush.xpose.msra.mxu0 %v247
        %312 = vmatpush.xpose.msra.mxu0 %v245
        %313 = vmatpush.xpose.msra.mxu0 %v243
        %314 = vmatmul.f32.gmra.mxu0 %v241
        %v315 = vpop.f32.mrf.mxu0
        %v316 = vadd.f32 %v296, %v315
        %317 = vdwg.mxu0
        %v318 = vxor.u32 %v316, 2147483648
        %v319 = vmul.f32 %v318, 1.442695
        %v320 = vpow.pop %v319
        %v321 = vadd.f32 %v320, 1.0
        %v322 = vrcp.pop %v321
        %v323 = vmul.f32 %v321, %v322
        %v324 = vsub.f32 1.0, %v323
        %v325 = vmul.f32 %v322, %v324
        %v326 = vadd.f32 %v322, %v325
        %vm327 = vweird.f32 %v321
        %vm328 = vweird.f32 %v322
        %vm329 = vmor %vm327, %vm328
        %v330 = vsel %vm329, %v322, %v326
        %v331 = vand.u32 2147483647, %v321
        %vm332 = vcmp.eq.f32.partialorder %v331, 8.507059e+37
        %v333 = vand.u32 %v321, 2147483648
        %v334 = vor.u32 1.1754944e-38, %v333
        %v335 = vsel %vm332, %v334, %v330
        %v336 = vmul.f32 1.0, %v335
        %337 = vst [vmem:[%s238] sm:$0xff] %v336
        %s338 = sand.u32 %s102, 1
        %s339 = scalar_lea.sflag [#allocation4], %s338
        %s340 = sand.u32 %s102, 1
        %s341 = smul.addr %s340, 8
        %s342 = scalar_lea.vmem [#allocation8], %s341
        // Predicated region
        $region45: #{tpu_custom_call.1} parent=31 // pred_check
          %p343 = pneg %p112
        $region46: #{tpu_custom_call.1} parent=31 // pred_check_branch
          %345 = sbr.rel (%p343) target = $region48
        $region47: #{tpu_custom_call.1} parent=31 // pred_region
          %347 = vsyncadd %s339, 0
          %s348 = smul.addr %s21, 8
          %s349 = scalar_lea.hbm %s3, %s348
          %s351 = sshll.u32 %s342, 4
          %s352 = int_to_ptr.vmem [resolvable:$true] %s351
          %s353 = sshll.u32 %s349, 4
          %s354 = int_to_ptr.hbm [resolvable:$true] %s353
          %356 = dma.vmem_to_hbm [thread:$0]  %s352, 128, %s354, %s339
        $region48: #{tpu_custom_call.1} parent=31 // pred_fallthru
          _
      $region32: #{tpu_custom_call.1} parent=5 // pred_fallthru
        _
      %p357 = scmp.le.s32.totalorder 2, %s16
      // Predicated region
      $region49: #{tpu_custom_call.1} parent=5 // pred_check
        %p358 = pneg %p357
      $region50: #{tpu_custom_call.1} parent=5 // pred_check_branch
        %360 = sbr.rel (%p358) target = $region52
      $region51: #{tpu_custom_call.1} parent=5 // pred_region
        %s361 = ssub.s32 %s16, 2
        // Predicated region
        $region53: #{tpu_custom_call.1} parent=51 // pred_check
          %p362 = pneg %p118
        $region54: #{tpu_custom_call.1} parent=51 // pred_check_branch
          %364 = sbr.rel (%p362) target = $region56
        $region55: #{tpu_custom_call.1} parent=51 // pred_region
          %s365 = sand.u32 %s103, 1
          %s366 = scalar_lea.sflag [#allocation4], %s365
          %s367 = sand.u32 %s103, 1
          %s368 = smul.addr %s367, 8
          %s369 = scalar_lea.vmem [#allocation8], %s368
          %371 = dma.done %s366, 128
        $region56: #{tpu_custom_call.1} parent=51 // pred_fallthru
          _
      $region52: #{tpu_custom_call.1} parent=5 // pred_fallthru
        _
    $region6: #{tpu_custom_call.1} parent=1 // loop_footer
      %s20 = sadd.s32 1, %s16
    $region7: #{tpu_custom_call.1} parent=1 // loop_footer_branch
      %15 = sbr.rel target = $region3
    $region8: #{tpu_custom_call.1} parent=1 // loop_exit
      _
    %372 = vsyncpa [#allocation3], 1
    %s373 = scalar_lea.sflag [#allocation3], 1
    %374 = vsyncpa %s373, 1
    %375 = vsyncpa [#allocation6], 1
    %s376 = scalar_lea.sflag [#allocation6], 1
    %377 = vsyncpa %s376, 1
    %378 = vsyncpa [#allocation4], 1
    %s379 = scalar_lea.sflag [#allocation4], 1
    %380 = vsyncpa %s379, 1

</llo_original>
